<compile_context>
chip_gen: v7x
topology: tpu7x:2x2x1
jax: 0.10.0
libtpu: 0.0.40
codegen_flags: <defaults>
</compile_context>

<pallas_src>
import functools

import jax
import jax.numpy as jnp
from jax import lax
from jax.experimental import pallas as pl
from jax.experimental.pallas import tpu as pltpu


def _round_up(x, m):
    return (x + m - 1) // m * m


# ---------------------------------------------------------------------------
# Kernel 1: LSTM recurrence over a chunk of time steps (serial grid).
# ---------------------------------------------------------------------------
def lstm_recurrence_kernel(gx_ref, whh_ref, h_out_ref, h_scr, c_scr):
    """gx_ref:    (Tc, B, 4*Hp) f32  -- precomputed x @ W_ih + (b_ih + b_hh)
       whh_ref:   (Hp, 4*Hp)    bf16
       h_out_ref: (Tc, B, Hp)   f32
       h_scr/c_scr: (B, Hp) f32 persistent recurrent state."""
    # Initialize recurrent state on the very first chunk only.
    @pl.when(pl.program_id(0) == 0)
    def _():
        h_scr[...] = jnp.zeros_like(h_scr)
        c_scr[...] = jnp.zeros_like(c_scr)

    tc = gx_ref.shape[0]
    hp = h_scr.shape[-1]
    w_hh = whh_ref[...]          # hoisted: resident for the whole chunk

    def step(s, carry):
        h, c = carry
        gates = gx_ref[s] + jnp.dot(h.astype(jnp.bfloat16), w_hh,
                                    preferred_element_type=jnp.float32)
        # PyTorch gate order i, f, g, o; each slice is lane-aligned (Hp % 128 == 0).
        i_g = jax.nn.sigmoid(gates[:, 0 * hp:1 * hp])
        f_g = jax.nn.sigmoid(gates[:, 1 * hp:2 * hp])
        g_g = jnp.tanh(gates[:, 2 * hp:3 * hp])
        o_g = jax.nn.sigmoid(gates[:, 3 * hp:4 * hp])
        c = f_g * c + i_g * g_g
        h = o_g * jnp.tanh(c)
        h_out_ref[s] = h
        return (h, c)

    h_fin, c_fin = lax.fori_loop(0, tc, step, (h_scr[...], c_scr[...]),
                                 unroll=True)
    h_scr[...] = h_fin
    c_scr[...] = c_fin


# ---------------------------------------------------------------------------
# Kernel 2: output projection + log_softmax over a tile of (b, t) rows.
# ---------------------------------------------------------------------------
def project_logsoftmax_kernel(h_ref, wout_ref, bout_ref, logp_ref):
    """h_ref: (R, Hp) f32; wout_ref: (Hp, Vp) bf16; bout_ref: (1, Vp) f32
       (padded vocab columns of bout are -1e30, so exp() underflows to 0);
       logp_ref: (R, Vp) f32."""
    logits = jnp.dot(h_ref[...].astype(jnp.bfloat16), wout_ref[...],
                     preferred_element_type=jnp.float32) + bout_ref[...]
    m = jnp.max(logits, axis=-1, keepdims=True)
    lse = jnp.log(jnp.sum(jnp.exp(logits - m), axis=-1, keepdims=True)) + m
    logp_ref[...] = logits - lse


# ---------------------------------------------------------------------------
# Wrapper
# ---------------------------------------------------------------------------
@functools.partial(jax.jit, static_argnames=("t_chunk", "row_chunk"))
def rnnlm_forward(token_ids, embedding, W_ih, W_hh, b_ih, b_hh, W_out, b_out,
                  *, t_chunk=4, row_chunk=256):
    """token_ids: (B, T) int32; embedding: (V, E);
       W_ih: (E, 4H), W_hh: (H, 4H)  (= torch weights transposed, gates i,f,g,o);
       b_ih/b_hh: (4H,); W_out: (H, V) (= torch Linear weight^T); b_out: (V,).
       Returns log-probs (B, T, V) f32, matching RNNLM.forward."""
    B, T = token_ids.shape
    V, E = embedding.shape
    H = W_hh.shape[0]

    Hp = _round_up(H, 128)
    Vp = _round_up(V, 128)

    # ---- padded / bf16 parameters: gate k lives at columns [k*Hp, k*Hp+H) ----
    def gate_pad(w):                     # (..., 4H) -> (..., 4Hp), zero filled
        pads = [(0, 0)] * (w.ndim - 1) + [(0, Hp - H)]
        return jnp.concatenate(
            [jnp.pad(w[..., k * H:(k + 1) * H], pads) for k in range(4)], axis=-1)

    Wih_p = gate_pad(W_ih).astype(jnp.bfloat16)                          # (E, 4Hp)
    Whh_p = jnp.pad(gate_pad(W_hh), ((0, Hp - H), (0, 0))).astype(jnp.bfloat16)
    b_p = gate_pad((b_ih + b_hh)[None, :]).astype(jnp.float32)           # (1, 4Hp)
    Wout_p = jnp.pad(W_out, ((0, Hp - H), (0, Vp - V))).astype(jnp.bfloat16)
    bout_p = jnp.pad(b_out[None, :].astype(jnp.float32), ((0, 0), (0, Vp - V)))
    if Vp != V:   # padded vocab columns must not contribute to the softmax
        bout_p = jnp.where(jnp.arange(Vp)[None, :] < V, bout_p, -1e30)

    # ---- XLA glue: embedding gather (time-major) + input projection as one
    #      big non-recurrent matmul (removes half the MXU work from the
    #      serial critical path) ----
    emb_tm = embedding[token_ids.T]                                      # (T, B, E)
    gx = jnp.dot(emb_tm.reshape(T * B, E).astype(jnp.bfloat16), Wih_p,
                 preferred_element_type=jnp.float32)
    gx = gx.reshape(T, B, 4 * Hp) + b_p                                  # (T, B, 4Hp)

    Tc = max(1, min(t_chunk, T))
    Tpad = _round_up(T, Tc)
    if Tpad != T:
        gx = jnp.pad(gx, ((0, Tpad - T), (0, 0), (0, 0)))

    # ---- Kernel 1: serial recurrence, h/c resident in VMEM scratch ----
    hidden_tm = pl.pallas_call(
        lstm_recurrence_kernel,
        out_shape=jax.ShapeDtypeStruct((Tpad, B, Hp), jnp.float32),
        grid_spec=pltpu.PrefetchScalarGridSpec(
            num_scalar_prefetch=0,
            grid=(Tpad // Tc,),
            in_specs=[
                pl.BlockSpec((Tc, B, 4 * Hp), lambda i: (i, 0, 0)),      # gx chunk
                pl.BlockSpec((Hp, 4 * Hp), lambda i: (0, 0)),            # W_hh
            ],
            out_specs=pl.BlockSpec((Tc, B, Hp), lambda i: (i, 0, 0)),
            scratch_shapes=[pltpu.VMEM((B, Hp), jnp.float32),            # h state
                            pltpu.VMEM((B, Hp), jnp.float32)],           # c state
        ),
        compiler_params=pltpu.CompilerParams(
            dimension_semantics=("arbitrary",),          # true recurrence
            vmem_limit_bytes=48 * 1024 * 1024),
    )(gx, Whh_p)

    # ---- Kernel 2: projection + log_softmax, parallel over (b, t) rows ----
    # Transpose the *small* hidden tensor (Hp << Vp) so the (B, T, V) output
    # needs no post-transpose; reshape to rows is a free bitcast.
    h_rows = jnp.transpose(hidden_tm[:T], (1, 0, 2)).reshape(B * T, Hp)
    N = B * T
    R = row_chunk if N >= row_chunk else _round_up(N, 8)
    Npad = _round_up(N, R)
    if Npad != N:
        h_rows = jnp.pad(h_rows, ((0, Npad - N), (0, 0)))

    # NOTE: for very large V (e.g. 32k vocab on v7x's 64 MiB VMEM), W_out
    # should additionally be tiled over V with an online log-softmax; at these
    # sizes the full (Hp, Vp) bf16 W_out comfortably stays resident.
    logp_rows = pl.pallas_call(
        project_logsoftmax_kernel,
        out_shape=jax.ShapeDtypeStruct((Npad, Vp), jnp.float32),
        grid_spec=pltpu.PrefetchScalarGridSpec(
            num_scalar_prefetch=0,
            grid=(Npad // R,),
            in_specs=[
                pl.BlockSpec((R, Hp), lambda i: (i, 0)),                 # hidden rows
                pl.BlockSpec((Hp, Vp), lambda i: (0, 0)),                # W_out
                pl.BlockSpec((1, Vp), lambda i: (0, 0)),                 # b_out
            ],
            out_specs=pl.BlockSpec((R, Vp), lambda i: (i, 0)),
        ),
        compiler_params=pltpu.CompilerParams(
            dimension_semantics=("parallel",),           # shardable across TCs
            vmem_limit_bytes=48 * 1024 * 1024),
    )(h_rows, Wout_p, bout_p)

    # rows are batch-major (b*T + t) -> free reshape; slice off padding.
    return logp_rows[:N, :V].reshape(B, T, V)


# ---------------------------------------------------------------------------
# Pure-JAX f32 reference matching PyTorch nn.LSTM / log_softmax semantics.
# ---------------------------------------------------------------------------
def rnnlm_reference(token_ids, embedding, W_ih, W_hh, b_ih, b_hh, W_out, b_out):
    emb = embedding[token_ids]                    # (B, T, E)
    B = emb.shape[0]
    H = W_hh.shape[0]

    def step(carry, x_t):
        h, c = carry
        gates = x_t @ W_ih + h @ W_hh + (b_ih + b_hh)
        i = jax.nn.sigmoid(gates[:, 0 * H:1 * H])
        f = jax.nn.sigmoid(gates[:, 1 * H:2 * H])
        g = jnp.tanh(gates[:, 2 * H:3 * H])
        o = jax.nn.sigmoid(gates[:, 3 * H:4 * H])
        c = f * c + i * g
        h = o * jnp.tanh(c)
        return (h, c), h

    h0 = jnp.zeros((B, H), jnp.float32)
    c0 = jnp.zeros((B, H), jnp.float32)
    _, hs = lax.scan(step, (h0, c0), jnp.transpose(emb, (1, 0, 2)))
    hidden = jnp.transpose(hs, (1, 0, 2))          # (B, T, H)
    return jax.nn.log_softmax(hidden @ W_out + b_out, axis=2)


if __name__ == "__main__":
    vocab_size = 64
    embedding_dim = 16
    hidden_size = 32
    batch = 2
    seq_len = 8

    key = jax.random.PRNGKey(0)
    (k_ids, k_emb, k_wih, k_whh,
     k_bih, k_bhh, k_wout, k_bout) = jax.random.split(key, 8)

    token_ids = jax.random.randint(k_ids, (batch, seq_len), 0, vocab_size,
                                   dtype=jnp.int32)

    scale = 0.3
    embedding = (scale * jax.random.normal(k_emb, (vocab_size, embedding_dim))
                 ).astype(jnp.float32)
    # Stored transposed relative to torch: (E, 4H) / (H, 4H) / (H, V).
    W_ih = (scale * jax.random.normal(k_wih, (embedding_dim, 4 * hidden_size))
            ).astype(jnp.float32)
    W_hh = (scale * jax.random.normal(k_whh, (hidden_size, 4 * hidden_size))
            ).astype(jnp.float32)
    b_ih = (scale * jax.random.normal(k_bih, (4 * hidden_size,))).astype(jnp.float32)
    b_hh = (scale * jax.random.normal(k_bhh, (4 * hidden_size,))).astype(jnp.float32)
    W_out = (scale * jax.random.normal(k_wout, (hidden_size, vocab_size))
             ).astype(jnp.float32)
    b_out = (scale * jax.random.normal(k_bout, (vocab_size,))).astype(jnp.float32)

    log_probs = rnnlm_forward(token_ids, embedding, W_ih, W_hh, b_ih, b_hh,
                              W_out, b_out, t_chunk=4)
    log_probs = jax.block_until_ready(log_probs)
    assert log_probs.shape == (batch, seq_len, vocab_size)

    ref = rnnlm_reference(token_ids, embedding, W_ih, W_hh, b_ih, b_hh,
                          W_out, b_out)
    max_err = float(jnp.max(jnp.abs(log_probs - ref)))
    # bf16 matmul operands with f32 accumulation: expect a few e-3 abs error.
    assert max_err < 5e-2, max_err

    print("KERNEL_OK")
</pallas_src>

<mosaic_0001>
module attributes {stable_mosaic.version = 11 : i64} {
  func.func @lstm_recurrence_kernel(%arg0: i32, %arg1: memref<4x2x512xf32, #tpu.memory_space<vmem>>, %arg2: memref<128x512xbf16, #tpu.memory_space<vmem>>, %arg3: memref<4x2x128xf32, #tpu.memory_space<vmem>>, %arg4: memref<2x128xf32, #tpu.memory_space<vmem>>, %arg5: memref<2x128xf32, #tpu.memory_space<vmem>>) attributes {dimension_semantics = [#tpu.dimension_semantics<arbitrary>], iteration_bounds = array<i64: 2>, scalar_prefetch = 0 : i64, scratch_operands = 2 : i64, tpu.core_type = #tpu.core_type<tc>, window_params = [{transform_indices = @transform_0, window_bounds = array<i64: 4, 2, 512>}, {pipeline_mode = #tpu.pipeline_mode<synchronous>, transform_indices = @transform_1, window_bounds = array<i64: 128, 512>}, {transform_indices = @transform_2, window_bounds = array<i64: 4, 2, 128>}]} {
    %c0_i32 = arith.constant 0 : i32
    %0 = arith.cmpi eq, %arg0, %c0_i32 : i32
    %1 = arith.extui %0 : i1 to i32
    %c0_i32_0 = arith.constant 0 : i32
    %2 = arith.cmpi ne, %1, %c0_i32_0 : i32
    scf.if %2 {
      %cst_42 = arith.constant 0.000000e+00 : f32
      %148 = vector.broadcast %cst_42 : f32 to vector<2x128xf32>
      %c0_43 = arith.constant 0 : index
      %c0_44 = arith.constant 0 : index
      %149 = vector.load %arg4[%c0_43, %c0_44] : memref<2x128xf32, #tpu.memory_space<vmem>>, vector<2x128xf32>
      tpu.vector_store %arg4[%c0_43, %c0_44], %148 {strides = array<i32>} : memref<2x128xf32, #tpu.memory_space<vmem>>, vector<2x128xf32>,
      %cst_45 = arith.constant 0.000000e+00 : f32
      %150 = vector.broadcast %cst_45 : f32 to vector<2x128xf32>
      %c0_46 = arith.constant 0 : index
      %c0_47 = arith.constant 0 : index
      %151 = vector.load %arg5[%c0_46, %c0_47] : memref<2x128xf32, #tpu.memory_space<vmem>>, vector<2x128xf32>
      tpu.vector_store %arg5[%c0_46, %c0_47], %150 {strides = array<i32>} : memref<2x128xf32, #tpu.memory_space<vmem>>, vector<2x128xf32>,
    } else {
    }
    %c0 = arith.constant 0 : index
    %c0_1 = arith.constant 0 : index
    %3 = vector.load %arg2[%c0, %c0_1] : memref<128x512xbf16, #tpu.memory_space<vmem>>, vector<128x512xbf16>
    %c0_2 = arith.constant 0 : index
    %c0_3 = arith.constant 0 : index
    %4 = vector.load %arg4[%c0_2, %c0_3] : memref<2x128xf32, #tpu.memory_space<vmem>>, vector<2x128xf32>
    %c0_4 = arith.constant 0 : index
    %c0_5 = arith.constant 0 : index
    %5 = vector.load %arg5[%c0_4, %c0_5] : memref<2x128xf32, #tpu.memory_space<vmem>>, vector<2x128xf32>
    %c0_i32_6 = arith.constant 0 : i32
    %6 = arith.index_cast %c0_i32_6 : i32 to index
    %c0_7 = arith.constant 0 : index
    %c0_8 = arith.constant 0 : index
    %7 = vector.load %arg1[%6, %c0_7, %c0_8] : memref<4x2x512xf32, #tpu.memory_space<vmem>>, vector<1x2x512xf32>
    %8 = vector.shape_cast %7 : vector<1x2x512xf32> to vector<2x512xf32>
    %9 = arith.truncf %4 : vector<2x128xf32> to vector<2x128xbf16>
    %cst = arith.constant dense<0.000000e+00> : vector<2x512xf32>
    %10 = tpu.matmul %9, %3, %cst {dimension_numbers = #tpu.dot_dimension_numbers<[1], [0], [0], [1], [0, 0, 1, 1], [], []>} : vector<2x128xbf16>, vector<128x512xbf16>, vector<2x512xf32> -> vector<2x512xf32>
    %11 = arith.addf %8, %10 : vector<2x512xf32>
    %12 = vector.extract_strided_slice %11 {offsets = [0, 0], sizes = [2, 128], strides = [1, 1]} : vector<2x512xf32> to vector<2x128xf32>
    %13 = arith.negf %12 : vector<2x128xf32>
    %14 = math.exp %13 : vector<2x128xf32>
    %cst_9 = arith.constant 1.000000e+00 : f32
    %15 = vector.broadcast %cst_9 : f32 to vector<2x128xf32>
    %16 = arith.addf %15, %14 : vector<2x128xf32>
    %17 = arith.divf %15, %16 : vector<2x128xf32>
    %18 = vector.extract_strided_slice %11 {offsets = [0, 128], sizes = [2, 128], strides = [1, 1]} : vector<2x512xf32> to vector<2x128xf32>
    %19 = arith.negf %18 : vector<2x128xf32>
    %20 = math.exp %19 : vector<2x128xf32>
    %cst_10 = arith.constant 1.000000e+00 : f32
    %21 = vector.broadcast %cst_10 : f32 to vector<2x128xf32>
    %22 = arith.addf %21, %20 : vector<2x128xf32>
    %23 = arith.divf %21, %22 : vector<2x128xf32>
    %24 = vector.extract_strided_slice %11 {offsets = [0, 256], sizes = [2, 128], strides = [1, 1]} : vector<2x512xf32> to vector<2x128xf32>
    %25 = math.tanh %24 : vector<2x128xf32>
    %26 = vector.extract_strided_slice %11 {offsets = [0, 384], sizes = [2, 128], strides = [1, 1]} : vector<2x512xf32> to vector<2x128xf32>
    %27 = arith.negf %26 : vector<2x128xf32>
    %28 = math.exp %27 : vector<2x128xf32>
    %cst_11 = arith.constant 1.000000e+00 : f32
    %29 = vector.broadcast %cst_11 : f32 to vector<2x128xf32>
    %30 = arith.addf %29, %28 : vector<2x128xf32>
    %31 = arith.divf %29, %30 : vector<2x128xf32>
    %32 = arith.mulf %23, %5 : vector<2x128xf32>
    %33 = arith.mulf %17, %25 : vector<2x128xf32>
    %34 = arith.addf %32, %33 : vector<2x128xf32>
    %35 = math.tanh %34 : vector<2x128xf32>
    %36 = arith.mulf %31, %35 : vector<2x128xf32>
    %37 = arith.index_cast %c0_i32_6 : i32 to index
    %c0_12 = arith.constant 0 : index
    %c0_13 = arith.constant 0 : index
    %38 = vector.load %arg3[%37, %c0_12, %c0_13] : memref<4x2x128xf32, #tpu.memory_space<vmem>>, vector<1x2x128xf32>
    %39 = vector.shape_cast %38 : vector<1x2x128xf32> to vector<2x128xf32>
    %40 = vector.shape_cast %36 : vector<2x128xf32> to vector<1x2x128xf32>
    tpu.vector_store %arg3[%37, %c0_12, %c0_13], %40 {strides = array<i32>} : memref<4x2x128xf32, #tpu.memory_space<vmem>>, vector<1x2x128xf32>,
    %c1_i32 = arith.constant 1 : i32
    %41 = arith.index_cast %c1_i32 : i32 to index
    %c0_14 = arith.constant 0 : index
    %c0_15 = arith.constant 0 : index
    %42 = vector.load %arg1[%41, %c0_14, %c0_15] : memref<4x2x512xf32, #tpu.memory_space<vmem>>, vector<1x2x512xf32>
    %43 = vector.shape_cast %42 : vector<1x2x512xf32> to vector<2x512xf32>
    %44 = arith.truncf %36 : vector<2x128xf32> to vector<2x128xbf16>
    %cst_16 = arith.constant dense<0.000000e+00> : vector<2x512xf32>
    %45 = tpu.matmul %44, %3, %cst_16 {dimension_numbers = #tpu.dot_dimension_numbers<[1], [0], [0], [1], [0, 0, 1, 1], [], []>} : vector<2x128xbf16>, vector<128x512xbf16>, vector<2x512xf32> -> vector<2x512xf32>
    %46 = arith.addf %43, %45 : vector<2x512xf32>
    %47 = vector.extract_strided_slice %46 {offsets = [0, 0], sizes = [2, 128], strides = [1, 1]} : vector<2x512xf32> to vector<2x128xf32>
    %48 = arith.negf %47 : vector<2x128xf32>
    %49 = math.exp %48 : vector<2x128xf32>
    %cst_17 = arith.constant 1.000000e+00 : f32
    %50 = vector.broadcast %cst_17 : f32 to vector<2x128xf32>
    %51 = arith.addf %50, %49 : vector<2x128xf32>
    %52 = arith.divf %50, %51 : vector<2x128xf32>
    %53 = vector.extract_strided_slice %46 {offsets = [0, 128], sizes = [2, 128], strides = [1, 1]} : vector<2x512xf32> to vector<2x128xf32>
    %54 = arith.negf %53 : vector<2x128xf32>
    %55 = math.exp %54 : vector<2x128xf32>
    %cst_18 = arith.constant 1.000000e+00 : f32
    %56 = vector.broadcast %cst_18 : f32 to vector<2x128xf32>
    %57 = arith.addf %56, %55 : vector<2x128xf32>
    %58 = arith.divf %56, %57 : vector<2x128xf32>
    %59 = vector.extract_strided_slice %46 {offsets = [0, 256], sizes = [2, 128], strides = [1, 1]} : vector<2x512xf32> to vector<2x128xf32>
    %60 = math.tanh %59 : vector<2x128xf32>
    %61 = vector.extract_strided_slice %46 {offsets = [0, 384], sizes = [2, 128], strides = [1, 1]} : vector<2x512xf32> to vector<2x128xf32>
    %62 = arith.negf %61 : vector<2x128xf32>
    %63 = math.exp %62 : vector<2x128xf32>
    %cst_19 = arith.constant 1.000000e+00 : f32
    %64 = vector.broadcast %cst_19 : f32 to vector<2x128xf32>
    %65 = arith.addf %64, %63 : vector<2x128xf32>
    %66 = arith.divf %64, %65 : vector<2x128xf32>
    %67 = arith.mulf %58, %34 : vector<2x128xf32>
    %68 = arith.mulf %52, %60 : vector<2x128xf32>
    %69 = arith.addf %67, %68 : vector<2x128xf32>
    %70 = math.tanh %69 : vector<2x128xf32>
    %71 = arith.mulf %66, %70 : vector<2x128xf32>
    %72 = arith.index_cast %c1_i32 : i32 to index
    %c0_20 = arith.constant 0 : index
    %c0_21 = arith.constant 0 : index
    %73 = vector.load %arg3[%72, %c0_20, %c0_21] : memref<4x2x128xf32, #tpu.memory_space<vmem>>, vector<1x2x128xf32>
    %74 = vector.shape_cast %73 : vector<1x2x128xf32> to vector<2x128xf32>
    %75 = vector.shape_cast %71 : vector<2x128xf32> to vector<1x2x128xf32>
    tpu.vector_store %arg3[%72, %c0_20, %c0_21], %75 {strides = array<i32>} : memref<4x2x128xf32, #tpu.memory_space<vmem>>, vector<1x2x128xf32>,
    %c2_i32 = arith.constant 2 : i32
    %76 = arith.index_cast %c2_i32 : i32 to index
    %c0_22 = arith.constant 0 : index
    %c0_23 = arith.constant 0 : index
    %77 = vector.load %arg1[%76, %c0_22, %c0_23] : memref<4x2x512xf32, #tpu.memory_space<vmem>>, vector<1x2x512xf32>
    %78 = vector.shape_cast %77 : vector<1x2x512xf32> to vector<2x512xf32>
    %79 = arith.truncf %71 : vector<2x128xf32> to vector<2x128xbf16>
    %cst_24 = arith.constant dense<0.000000e+00> : vector<2x512xf32>
    %80 = tpu.matmul %79, %3, %cst_24 {dimension_numbers = #tpu.dot_dimension_numbers<[1], [0], [0], [1], [0, 0, 1, 1], [], []>} : vector<2x128xbf16>, vector<128x512xbf16>, vector<2x512xf32> -> vector<2x512xf32>
    %81 = arith.addf %78, %80 : vector<2x512xf32>
    %82 = vector.extract_strided_slice %81 {offsets = [0, 0], sizes = [2, 128], strides = [1, 1]} : vector<2x512xf32> to vector<2x128xf32>
    %83 = arith.negf %82 : vector<2x128xf32>
    %84 = math.exp %83 : vector<2x128xf32>
    %cst_25 = arith.constant 1.000000e+00 : f32
    %85 = vector.broadcast %cst_25 : f32 to vector<2x128xf32>
    %86 = arith.addf %85, %84 : vector<2x128xf32>
    %87 = arith.divf %85, %86 : vector<2x128xf32>
    %88 = vector.extract_strided_slice %81 {offsets = [0, 128], sizes = [2, 128], strides = [1, 1]} : vector<2x512xf32> to vector<2x128xf32>
    %89 = arith.negf %88 : vector<2x128xf32>
    %90 = math.exp %89 : vector<2x128xf32>
    %cst_26 = arith.constant 1.000000e+00 : f32
    %91 = vector.broadcast %cst_26 : f32 to vector<2x128xf32>
    %92 = arith.addf %91, %90 : vector<2x128xf32>
    %93 = arith.divf %91, %92 : vector<2x128xf32>
    %94 = vector.extract_strided_slice %81 {offsets = [0, 256], sizes = [2, 128], strides = [1, 1]} : vector<2x512xf32> to vector<2x128xf32>
    %95 = math.tanh %94 : vector<2x128xf32>
    %96 = vector.extract_strided_slice %81 {offsets = [0, 384], sizes = [2, 128], strides = [1, 1]} : vector<2x512xf32> to vector<2x128xf32>
    %97 = arith.negf %96 : vector<2x128xf32>
    %98 = math.exp %97 : vector<2x128xf32>
    %cst_27 = arith.constant 1.000000e+00 : f32
    %99 = vector.broadcast %cst_27 : f32 to vector<2x128xf32>
    %100 = arith.addf %99, %98 : vector<2x128xf32>
    %101 = arith.divf %99, %100 : vector<2x128xf32>
    %102 = arith.mulf %93, %69 : vector<2x128xf32>
    %103 = arith.mulf %87, %95 : vector<2x128xf32>
    %104 = arith.addf %102, %103 : vector<2x128xf32>
    %105 = math.tanh %104 : vector<2x128xf32>
    %106 = arith.mulf %101, %105 : vector<2x128xf32>
    %107 = arith.index_cast %c2_i32 : i32 to index
    %c0_28 = arith.constant 0 : index
    %c0_29 = arith.constant 0 : index
    %108 = vector.load %arg3[%107, %c0_28, %c0_29] : memref<4x2x128xf32, #tpu.memory_space<vmem>>, vector<1x2x128xf32>
    %109 = vector.shape_cast %108 : vector<1x2x128xf32> to vector<2x128xf32>
    %110 = vector.shape_cast %106 : vector<2x128xf32> to vector<1x2x128xf32>
    tpu.vector_store %arg3[%107, %c0_28, %c0_29], %110 {strides = array<i32>} : memref<4x2x128xf32, #tpu.memory_space<vmem>>, vector<1x2x128xf32>,
    %c3_i32 = arith.constant 3 : i32
    %111 = arith.index_cast %c3_i32 : i32 to index
    %c0_30 = arith.constant 0 : index
    %c0_31 = arith.constant 0 : index
    %112 = vector.load %arg1[%111, %c0_30, %c0_31] : memref<4x2x512xf32, #tpu.memory_space<vmem>>, vector<1x2x512xf32>
    %113 = vector.shape_cast %112 : vector<1x2x512xf32> to vector<2x512xf32>
    %114 = arith.truncf %106 : vector<2x128xf32> to vector<2x128xbf16>
    %cst_32 = arith.constant dense<0.000000e+00> : vector<2x512xf32>
    %115 = tpu.matmul %114, %3, %cst_32 {dimension_numbers = #tpu.dot_dimension_numbers<[1], [0], [0], [1], [0, 0, 1, 1], [], []>} : vector<2x128xbf16>, vector<128x512xbf16>, vector<2x512xf32> -> vector<2x512xf32>
    %116 = arith.addf %113, %115 : vector<2x512xf32>
    %117 = vector.extract_strided_slice %116 {offsets = [0, 0], sizes = [2, 128], strides = [1, 1]} : vector<2x512xf32> to vector<2x128xf32>
    %118 = arith.negf %117 : vector<2x128xf32>
    %119 = math.exp %118 : vector<2x128xf32>
    %cst_33 = arith.constant 1.000000e+00 : f32
    %120 = vector.broadcast %cst_33 : f32 to vector<2x128xf32>
    %121 = arith.addf %120, %119 : vector<2x128xf32>
    %122 = arith.divf %120, %121 : vector<2x128xf32>
    %123 = vector.extract_strided_slice %116 {offsets = [0, 128], sizes = [2, 128], strides = [1, 1]} : vector<2x512xf32> to vector<2x128xf32>
    %124 = arith.negf %123 : vector<2x128xf32>
    %125 = math.exp %124 : vector<2x128xf32>
    %cst_34 = arith.constant 1.000000e+00 : f32
    %126 = vector.broadcast %cst_34 : f32 to vector<2x128xf32>
    %127 = arith.addf %126, %125 : vector<2x128xf32>
    %128 = arith.divf %126, %127 : vector<2x128xf32>
    %129 = vector.extract_strided_slice %116 {offsets = [0, 256], sizes = [2, 128], strides = [1, 1]} : vector<2x512xf32> to vector<2x128xf32>
    %130 = math.tanh %129 : vector<2x128xf32>
    %131 = vector.extract_strided_slice %116 {offsets = [0, 384], sizes = [2, 128], strides = [1, 1]} : vector<2x512xf32> to vector<2x128xf32>
    %132 = arith.negf %131 : vector<2x128xf32>
    %133 = math.exp %132 : vector<2x128xf32>
    %cst_35 = arith.constant 1.000000e+00 : f32
    %134 = vector.broadcast %cst_35 : f32 to vector<2x128xf32>
    %135 = arith.addf %134, %133 : vector<2x128xf32>
    %136 = arith.divf %134, %135 : vector<2x128xf32>
    %137 = arith.mulf %128, %104 : vector<2x128xf32>
    %138 = arith.mulf %122, %130 : vector<2x128xf32>
    %139 = arith.addf %137, %138 : vector<2x128xf32>
    %140 = math.tanh %139 : vector<2x128xf32>
    %141 = arith.mulf %136, %140 : vector<2x128xf32>
    %142 = arith.index_cast %c3_i32 : i32 to index
    %c0_36 = arith.constant 0 : index
    %c0_37 = arith.constant 0 : index
    %143 = vector.load %arg3[%142, %c0_36, %c0_37] : memref<4x2x128xf32, #tpu.memory_space<vmem>>, vector<1x2x128xf32>
    %144 = vector.shape_cast %143 : vector<1x2x128xf32> to vector<2x128xf32>
    %145 = vector.shape_cast %141 : vector<2x128xf32> to vector<1x2x128xf32>
    tpu.vector_store %arg3[%142, %c0_36, %c0_37], %145 {strides = array<i32>} : memref<4x2x128xf32, #tpu.memory_space<vmem>>, vector<1x2x128xf32>,
    %c4_i32 = arith.constant 4 : i32
    %c0_38 = arith.constant 0 : index
    %c0_39 = arith.constant 0 : index
    %146 = vector.load %arg4[%c0_38, %c0_39] : memref<2x128xf32, #tpu.memory_space<vmem>>, vector<2x128xf32>
    tpu.vector_store %arg4[%c0_38, %c0_39], %141 {strides = array<i32>} : memref<2x128xf32, #tpu.memory_space<vmem>>, vector<2x128xf32>,
    %c0_40 = arith.constant 0 : index
    %c0_41 = arith.constant 0 : index
    %147 = vector.load %arg5[%c0_40, %c0_41] : memref<2x128xf32, #tpu.memory_space<vmem>>, vector<2x128xf32>
    tpu.vector_store %arg5[%c0_40, %c0_41], %139 {strides = array<i32>} : memref<2x128xf32, #tpu.memory_space<vmem>>, vector<2x128xf32>,
    return
  }
  func.func @transform_0(%arg0: i32) -> (i32, i32, i32) {
    %c0_i32 = arith.constant 0 : i32
    %c0_i32_0 = arith.constant 0 : i32
    %c0_i32_1 = arith.constant 0 : i32
    return %arg0, %c0_i32, %c0_i32_0 : i32, i32, i32
  }
  func.func @transform_1(%arg0: i32) -> (i32, i32) {
    %c0_i32 = arith.constant 0 : i32
    %c0_i32_0 = arith.constant 0 : i32
    %c0_i32_1 = arith.constant 0 : i32
    return %c0_i32, %c0_i32_0 : i32, i32
  }
  func.func @transform_2(%arg0: i32) -> (i32, i32, i32) {
    %c0_i32 = arith.constant 0 : i32
    %c0_i32_0 = arith.constant 0 : i32
    %c0_i32_1 = arith.constant 0 : i32
    return %arg0, %c0_i32, %c0_i32_0 : i32, i32, i32
  }
}

module attributes {stable_mosaic.version = 11 : i64} {
  func.func @project_logsoftmax_kernel(%arg0: i32, %arg1: memref<16x128xf32, #tpu.memory_space<vmem>>, %arg2: memref<128x128xbf16, #tpu.memory_space<vmem>>, %arg3: memref<1x128xf32, #tpu.memory_space<vmem>>, %arg4: memref<16x128xf32, #tpu.memory_space<vmem>>) attributes {dimension_semantics = [#tpu.dimension_semantics<parallel>], iteration_bounds = array<i64: 1>, scalar_prefetch = 0 : i64, scratch_operands = 0 : i64, tpu.core_type = #tpu.core_type<tc>, window_params = [{transform_indices = @transform_0, window_bounds = array<i64: 16, 128>}, {pipeline_mode = #tpu.pipeline_mode<synchronous>, transform_indices = @transform_1, window_bounds = array<i64: 128, 128>}, {pipeline_mode = #tpu.pipeline_mode<synchronous>, transform_indices = @transform_2, window_bounds = array<i64: 1, 128>}, {transform_indices = @transform_3, window_bounds = array<i64: 16, 128>}]} {
    %c0 = arith.constant 0 : index
    %c0_0 = arith.constant 0 : index
    %0 = vector.load %arg1[%c0, %c0_0] : memref<16x128xf32, #tpu.memory_space<vmem>>, vector<16x128xf32>
    %1 = arith.truncf %0 : vector<16x128xf32> to vector<16x128xbf16>
    %c0_1 = arith.constant 0 : index
    %c0_2 = arith.constant 0 : index
    %2 = vector.load %arg2[%c0_1, %c0_2] : memref<128x128xbf16, #tpu.memory_space<vmem>>, vector<128x128xbf16>
    %cst = arith.constant dense<0.000000e+00> : vector<16x128xf32>
    %3 = tpu.matmul %1, %2, %cst {dimension_numbers = #tpu.dot_dimension_numbers<[1], [0], [0], [1], [0, 0, 1, 1], [], []>} : vector<16x128xbf16>, vector<128x128xbf16>, vector<16x128xf32> -> vector<16x128xf32>
    %c0_3 = arith.constant 0 : index
    %c0_4 = arith.constant 0 : index
    %4 = vector.load %arg3[%c0_3, %c0_4] : memref<1x128xf32, #tpu.memory_space<vmem>>, vector<1x128xf32>
    %5 = vector.broadcast %4 : vector<1x128xf32> to vector<16x128xf32>
    %6 = arith.addf %3, %5 : vector<16x128xf32>
    %cst_5 = arith.constant dense<0xFF800000> : vector<16xf32>
    %7 = vector.multi_reduction <maximumf>, %6, %cst_5 [1] : vector<16x128xf32> to vector<16xf32>
    %8 = vector.shape_cast %7 : vector<16xf32> to vector<16x1xf32>
    %9 = vector.broadcast %8 : vector<16x1xf32> to vector<16x128xf32>
    %10 = arith.subf %6, %9 : vector<16x128xf32>
    %11 = math.exp %10 : vector<16x128xf32>
    %cst_6 = arith.constant dense<0.000000e+00> : vector<16xf32>
    %12 = vector.multi_reduction <add>, %11, %cst_6 [1] : vector<16x128xf32> to vector<16xf32>
    %13 = vector.shape_cast %12 : vector<16xf32> to vector<16x1xf32>
    %14 = math.log %13 : vector<16x1xf32>
    %15 = arith.addf %14, %8 : vector<16x1xf32>
    %16 = vector.broadcast %15 : vector<16x1xf32> to vector<16x128xf32>
    %17 = arith.subf %6, %16 : vector<16x128xf32>
    %c0_7 = arith.constant 0 : index
    %c0_8 = arith.constant 0 : index
    %18 = vector.load %arg4[%c0_7, %c0_8] : memref<16x128xf32, #tpu.memory_space<vmem>>, vector<16x128xf32>
    tpu.vector_store %arg4[%c0_7, %c0_8], %17 {strides = array<i32>} : memref<16x128xf32, #tpu.memory_space<vmem>>, vector<16x128xf32>,
    return
  }
  func.func @transform_0(%arg0: i32) -> (i32, i32) {
    %c0_i32 = arith.constant 0 : i32
    %c0_i32_0 = arith.constant 0 : i32
    return %arg0, %c0_i32 : i32, i32
  }
  func.func @transform_1(%arg0: i32) -> (i32, i32) {
    %c0_i32 = arith.constant 0 : i32
    %c0_i32_0 = arith.constant 0 : i32
    %c0_i32_1 = arith.constant 0 : i32
    return %c0_i32, %c0_i32_0 : i32, i32
  }
  func.func @transform_2(%arg0: i32) -> (i32, i32) {
    %c0_i32 = arith.constant 0 : i32
    %c0_i32_0 = arith.constant 0 : i32
    %c0_i32_1 = arith.constant 0 : i32
    return %c0_i32, %c0_i32_0 : i32, i32
  }
  func.func @transform_3(%arg0: i32) -> (i32, i32) {
    %c0_i32 = arith.constant 0 : i32
    %c0_i32_0 = arith.constant 0 : i32
    return %arg0, %c0_i32 : i32, i32
  }
}

</mosaic_0001>

<llo_original>
// kernel: rnnlm_forward.3
$region0: #{rnnlm_forward.3}
  #allocation0 [shape = 'u32[]', space=smem, size = 0x4, offset = 0x4, fixed_abs, tag = 'smem constant byte address 0x4 - core index']
  #allocation1 [shape = 'u32[144,128]{1,0:T(1,128)}', space=vmem, size = 0x12000, scoped, tag = 'internal scratch']
  %s0 = inlined_call_operand.vmem [shape: f32[16,128], index: 0, kind: input, shape index: {}]
  %s1 = inlined_call_operand.vmem [shape: bf16[128,128], index: 1, kind: input, shape index: {}]
  %s2 = inlined_call_operand.vmem [shape: f32[1,128], index: 2, kind: input, shape index: {}]
  %s3 = inlined_call_operand.vmem [shape: f32[16,128], index: 3, kind: output, shape index: {}]
  %s4 = sld [smem:[#allocation0]]
  $region22: #{rnnlm_forward.3} parent=0
    _
  %s6 = ssub.s32 1, %s4
  %s7 = scalar_select 0, %s6, %s4
  // Predicated region
  $region2: #{rnnlm_forward.3} parent=0 // pred_check
    _
  $region3: #{rnnlm_forward.3} parent=0 // pred_check_branch
    %9 = sbr.rel (0) target = $region5
  $region4: #{rnnlm_forward.3} parent=0 // pred_region
    _
  $region5: #{rnnlm_forward.3} parent=0 // pred_fallthru
    _
  // Predicated region
  $region6: #{rnnlm_forward.3} parent=0 // pred_check
    _
  $region7: #{rnnlm_forward.3} parent=0 // pred_check_branch
    %11 = sbr.rel (0) target = $region9
  $region8: #{rnnlm_forward.3} parent=0 // pred_region
    _
  $region9: #{rnnlm_forward.3} parent=0 // pred_fallthru
    _
  // Predicated region
  $region10: #{rnnlm_forward.3} parent=0 // pred_check
    _
  $region11: #{rnnlm_forward.3} parent=0 // pred_check_branch
    %13 = sbr.rel (0) target = $region13
  $region12: #{rnnlm_forward.3} parent=0 // pred_region
    _
  $region13: #{rnnlm_forward.3} parent=0 // pred_fallthru
    _
  %v15 = vld [vmem:[%s0] sm:$0xff]
  %v16 = vld [vmem:[%s0 + $0x8] sm:$0xff]
  %v17 = vpack.c.bf16 %v16, %v15
  %v18 = vld [vmem:[%s1] sm:$0xf]
  %v19 = vld [vmem:[%s1 + $0x4] sm:$0xf]
  %v20 = vld [vmem:[%s1 + $0x8] sm:$0xf]
  %v21 = vld [vmem:[%s1 + $0xc] sm:$0xf]
  %v22 = vld [vmem:[%s1 + $0x10] sm:$0xf]
  %v23 = vld [vmem:[%s1 + $0x14] sm:$0xf]
  %v24 = vld [vmem:[%s1 + $0x18] sm:$0xf]
  %v25 = vld [vmem:[%s1 + $0x1c] sm:$0xf]
  %v26 = vld [vmem:[%s1 + $0x20] sm:$0xf]
  %v27 = vld [vmem:[%s1 + $0x24] sm:$0xf]
  %v28 = vld [vmem:[%s1 + $0x28] sm:$0xf]
  %v29 = vld [vmem:[%s1 + $0x2c] sm:$0xf]
  %v30 = vld [vmem:[%s1 + $0x30] sm:$0xf]
  %v31 = vld [vmem:[%s1 + $0x34] sm:$0xf]
  %v32 = vld [vmem:[%s1 + $0x38] sm:$0xf]
  %v33 = vld [vmem:[%s1 + $0x3c] sm:$0xf]
  %v34 = vld [vmem:[%s2] sm:$0x1]
  %v36 = vlaneseq
  %v37 = vshrl.u32 %v36, 7
  %v38 = vsub.s32 0, %v37
  %v39 = vrot.slane %v34, %v38
  %v57 = vunpack.c.l.b16 %v18
  %v58 = vunpack.c.l.b16 %v19
  %v59 = vunpack.c.l.b16 %v20
  %v60 = vunpack.c.l.b16 %v21
  %v61 = vunpack.c.l.b16 %v22
  %v62 = vunpack.c.l.b16 %v23
  %v63 = vunpack.c.l.b16 %v24
  %v64 = vunpack.c.l.b16 %v25
  %v65 = vunpack.c.l.b16 %v26
  %v66 = vunpack.c.l.b16 %v27
  %v67 = vunpack.c.l.b16 %v28
  %v68 = vunpack.c.l.b16 %v29
  %v69 = vunpack.c.l.b16 %v30
  %v70 = vunpack.c.l.b16 %v31
  %v71 = vunpack.c.l.b16 %v32
  %v72 = vunpack.c.l.b16 %v33
  %v73 = vpack.c.b16 %v58, %v57
  %v74 = vpack.c.b16 %v60, %v59
  %v75 = vpack.c.b16 %v62, %v61
  %v76 = vpack.c.b16 %v64, %v63
  %v77 = vpack.c.b16 %v66, %v65
  %v78 = vpack.c.b16 %v68, %v67
  %v79 = vpack.c.b16 %v70, %v69
  %v80 = vpack.c.b16 %v72, %v71
  %89 = vmatprep.subr.bf16.mxu0 0
  %90 = vmatpush1.bf16.msra.mxu0 %v73
  %91 = vmatprep.subr.bf16.mxu0 0
  %92 = vmatpush1.bf16.msra.mxu0 %v74
  %93 = vmatprep.subr.bf16.mxu0 0
  %94 = vmatpush1.bf16.msra.mxu0 %v75
  %95 = vmatprep.subr.bf16.mxu0 0
  %96 = vmatpush1.bf16.msra.mxu0 %v76
  %97 = vmatprep.subr.bf16.mxu0 0
  %98 = vmatpush1.bf16.msra.mxu0 %v77
  %99 = vmatprep.subr.bf16.mxu0 0
  %100 = vmatpush1.bf16.msra.mxu0 %v78
  %101 = vmatprep.subr.bf16.mxu0 0
  %102 = vmatpush1.bf16.msra.mxu0 %v79
  %103 = vmatprep.subr.bf16.mxu0 0
  %104 = vmatpush1.bf16.msra.mxu0 %v80
  %105 = vmatprep.subr.bf16.mxu0 0
  %106 = vmatpush1.bf16.msra.mxu0 0
  %107 = vmatprep.subr.bf16.mxu0 0
  %108 = vmatpush1.bf16.msra.mxu0 0
  %109 = vmatprep.subr.bf16.mxu0 0
  %110 = vmatpush1.bf16.msra.mxu0 0
  %111 = vmatprep.subr.bf16.mxu0 0
  %112 = vmatpush1.bf16.msra.mxu0 0
  %113 = vmatprep.subr.bf16.mxu0 0
  %114 = vmatpush1.bf16.msra.mxu0 0
  %115 = vmatprep.subr.bf16.mxu0 0
  %116 = vmatpush1.bf16.msra.mxu0 0
  %117 = vmatprep.subr.bf16.mxu0 0
  %118 = vmatpush1.bf16.msra.mxu0 0
  %119 = vmatprep.subr.bf16.mxu0 0
  %120 = vmatpush1.bf16.msra.mxu0 0
  %121 = vmatprep.mubr.bf16.mxu0 0
  %122 = vmatmul.mubr.bf16.gmra.mrb[0].mxu0 %v17
  %v123 = vpop.f32.mrb[0].mxu0
  %v124 = vadd.f32 %v39, %v123
  %v125 = vpop.f32.mrb[0].mxu0
  %v126 = vpop.f32.mrb[0].mxu0
  %v127 = vadd.f32 %v39, %v126
  %v128 = vpop.f32.mrb[0].mxu0
  %129 = vdwg.mxu0
  %130 = vmax.xlane.f32.xlu0 %v124
  %v131 = vpop.xlane.xlu0 %130
  %132 = vmax.xlane.f32.xlu0 %v127
  %v133 = vpop.xlane.xlu0 %132
  %v134 = vsub.f32 %v124, %v131
  %v135 = vsub.f32 %v127, %v133
  %v136 = vmul.f32 %v134, 1.442695
  %v137 = vpow.pop %v136
  %v138 = vmul.f32 %v135, 1.442695
  %v139 = vpow.pop %v138
  %140 = vadd.xlane.f32.xlu0 %v137
  %v141 = vpop.xlane.xlu0 %140
  %142 = vadd.xlane.f32.xlu0 %v139
  %v143 = vpop.xlane.xlu0 %142
  %v144 = vlog2.pop %v141
  %v145 = vmul.f32 %v144, 0.6931472
  %v146 = vlog2.pop %v143
  %v147 = vmul.f32 %v146, 0.6931472
  %v148 = vadd.f32 %v145, %v131
  %v149 = vadd.f32 %v147, %v133
  %v150 = vsub.f32 %v124, %v148
  %v151 = vsub.f32 %v127, %v149
  %152 = vst [vmem:[%s3] sm:$0xff] %v150
  %153 = vst [vmem:[%s3 + $0x8] sm:$0xff] %v151
  // Predicated region
  $region14: #{rnnlm_forward.3} parent=0 // pred_check
    _
  $region15: #{rnnlm_forward.3} parent=0 // pred_check_branch
    %155 = sbr.rel (0) target = $region17
  $region16: #{rnnlm_forward.3} parent=0 // pred_region
    _
  $region17: #{rnnlm_forward.3} parent=0 // pred_fallthru
    _
  // Predicated region
  $region18: #{rnnlm_forward.3} parent=0 // pred_check
    _
  $region19: #{rnnlm_forward.3} parent=0 // pred_check_branch
    %157 = sbr.rel (0) target = $region21
  $region20: #{rnnlm_forward.3} parent=0 // pred_region
    _
  $region21: #{rnnlm_forward.3} parent=0 // pred_fallthru
    _

// kernel: rnnlm_forward.2
$region0: #{rnnlm_forward.2}
  #allocation0 [shape = 'u32[]', space=smem, size = 0x4, offset = 0x4, fixed_abs, tag = 'smem constant byte address 0x4 - core index']
  #allocation1 [shape = 'u32[144,128]{1,0:T(1,128)}', space=vmem, size = 0x12000, scoped, tag = 'internal scratch']
  #allocation2 [shape = 'f32[2,128]{1,0:T(2,128)}', space=vmem, size = 0x400, scoped, tag = 'scratch operand']
  #allocation3 [shape = 'f32[2,128]{1,0:T(2,128)}', space=vmem, size = 0x400, scoped, tag = 'scratch operand']
  %s0 = inlined_call_operand.vmem [shape: f32[8,2,512], index: 0, kind: input, shape index: {}]
  %s1 = inlined_call_operand.vmem [shape: bf16[128,512], index: 1, kind: input, shape index: {}]
  %s2 = inlined_call_operand.vmem [shape: f32[8,2,128], index: 2, kind: output, shape index: {}]
  %s3 = sld [smem:[#allocation0]]
  $region45: #{rnnlm_forward.2} parent=0
    _
  %s5 = ssub.s32 1, %s3
  %s6 = scalar_select 0, %s5, %s3
  loop: start=0, step=1, limit=4
  $region2: #{rnnlm_forward.2} parent=0 // loop_pre_header
    _
  $region3: #{rnnlm_forward.2} parent=0 // loop_header
    %s8 = sphi 0, %s12
    %p9 = scmp.ge.s32.totalorder %s8, 4
    %s18 = sphi 0, %s20
    %s21 = sphi 0, %s18
    %s22 = sphi 0, %s21
    %s38 = sphi 0, %s22
    %s42 = sphi 0, %s42
    %s44 = sphi 0, %s42
    %s45 = sphi 0, %s44
    %s59 = sphi 0, %s45
    %s65 = sphi 0, %s67
    %s68 = sphi 0, %s65
    %s69 = sphi 0, %s68
    %s85 = sphi 0, %s69
  $region4: #{rnnlm_forward.2} parent=0 // loop_header_branch
    %11 = sbr.rel (%p9) target = $region8
  $region5: #{rnnlm_forward.2} parent=0 // loop_body
    %s13 = ssub.s32 %s8, 1
    %s14 = ssub.s32 %s8, 2
    %s15 = sadd.s32 %s8, 1
    %s16 = ssub.s32 %s8, %s15
    %p17 = scmp.eq.s32.totalorder %s16, 0
    %s19 = sadd.s32 %s18, 1
    %s20 = scalar_select %p17, %s18, %s19
    %p23 = pneg %p17
    %p24 = scmp.eq.s32.totalorder %s8, 1
    %p25 = por %p23, %p24
    %p26 = scmp.ne.s32.totalorder %s18, %s21
    %p27 = scmp.eq.s32.totalorder %s8, 0
    %p28 = por %p26, %p27
    %p29 = scmp.ne.s32.totalorder %s18, %s21
    %p30 = scmp.eq.s32.totalorder %s13, 1
    %p31 = por %p29, %p30
    %p32 = scmp.ne.s32.totalorder %s21, %s22
    %p33 = scmp.eq.s32.totalorder %s13, 0
    %p34 = por %p32, %p33
    %p35 = scmp.ne.s32.totalorder %s21, %s22
    %p36 = scmp.eq.s32.totalorder %s14, 1
    %p37 = por %p35, %p36
    %p39 = scmp.ne.s32.totalorder %s22, %s38
    %p40 = scmp.eq.s32.totalorder %s14, 0
    %p41 = por %p39, %p40
    %s43 = sadd.s32 %s42, 1
    %p46 = scmp.eq.s32.totalorder %s8, 1
    %p47 = scmp.ne.s32.totalorder %s42, %s44
    %p48 = scmp.eq.s32.totalorder %s8, 0
    %p49 = por %p47, %p48
    %p50 = scmp.ne.s32.totalorder %s42, %s44
    %p51 = scmp.eq.s32.totalorder %s13, 1
    %p52 = por %p50, %p51
    %p53 = scmp.ne.s32.totalorder %s44, %s45
    %p54 = scmp.eq.s32.totalorder %s13, 0
    %p55 = por %p53, %p54
    %p56 = scmp.ne.s32.totalorder %s44, %s45
    %p57 = scmp.eq.s32.totalorder %s14, 1
    %p58 = por %p56, %p57
    %p60 = scmp.ne.s32.totalorder %s45, %s59
    %p61 = scmp.eq.s32.totalorder %s14, 0
    %p62 = por %p60, %p61
    %s63 = ssub.s32 %s8, %s15
    %p64 = scmp.eq.s32.totalorder %s63, 0
    %s66 = sadd.s32 %s65, 1
    %s67 = scalar_select %p64, %s65, %s66
    %p70 = pneg %p64
    %p71 = scmp.eq.s32.totalorder %s8, 1
    %p72 = por %p70, %p71
    %p73 = scmp.ne.s32.totalorder %s65, %s68
    %p74 = scmp.eq.s32.totalorder %s8, 0
    %p75 = por %p73, %p74
    %p76 = scmp.ne.s32.totalorder %s65, %s68
    %p77 = scmp.eq.s32.totalorder %s13, 1
    %p78 = por %p76, %p77
    %p79 = scmp.ne.s32.totalorder %s68, %s69
    %p80 = scmp.eq.s32.totalorder %s13, 0
    %p81 = por %p79, %p80
    %p82 = scmp.ne.s32.totalorder %s68, %s69
    %p83 = scmp.eq.s32.totalorder %s14, 1
    %p84 = por %p82, %p83
    %p86 = scmp.ne.s32.totalorder %s69, %s85
    %p87 = scmp.eq.s32.totalorder %s14, 0
    %p88 = por %p86, %p87
    %p89 = scmp.le.s32.totalorder 1, %s8
    %p90 = scmp.lt.s32.totalorder %s8, 3
    %p91 = pnand %p89, %p90
    %p92 = pneg %p91
    // Predicated region
    $region9: #{rnnlm_forward.2} parent=5 // pred_check
      _
    $region10: #{rnnlm_forward.2} parent=5 // pred_check_branch
      %94 = sbr.rel (%p91) target = $region12
    $region11: #{rnnlm_forward.2} parent=5 // pred_region
      %s95 = ssub.s32 %s8, 1
      // Predicated region
      $region13: #{rnnlm_forward.2} parent=11 // pred_check
        %p96 = pneg %p55
      $region14: #{rnnlm_forward.2} parent=11 // pred_check_branch
        %98 = sbr.rel (%p96) target = $region16
      $region15: #{rnnlm_forward.2} parent=11 // pred_region
        _
      $region16: #{rnnlm_forward.2} parent=11 // pred_fallthru
        _
    $region12: #{rnnlm_forward.2} parent=5 // pred_fallthru
      _
    %p99 = scmp.lt.s32.totalorder %s8, 2
    // Predicated region
    $region17: #{rnnlm_forward.2} parent=5 // pred_check
      %p100 = pneg %p99
    $region18: #{rnnlm_forward.2} parent=5 // pred_check_branch
      %102 = sbr.rel (%p100) target = $region20
    $region19: #{rnnlm_forward.2} parent=5 // pred_region
      // Predicated region
      $region21: #{rnnlm_forward.2} parent=19 // pred_check
        %p103 = pneg %p28
      $region22: #{rnnlm_forward.2} parent=19 // pred_check_branch
        %105 = sbr.rel (%p103) target = $region24
      $region23: #{rnnlm_forward.2} parent=19 // pred_region
        %s106 = smul.u32 4, %s8
        %p107 = scmp.lt.s32.totalorder %s106, 7
        %s108 = scalar_select %p107, %s106, 7
        %s109 = smul.addr %s108, 4
        %s110 = smul.addr %s109, 2
        %s111 = scalar_lea.vmem %s0, %s110
        %s112 = smul.u32 4, %s8
      $region24: #{rnnlm_forward.2} parent=19 // pred_fallthru
        _
    $region20: #{rnnlm_forward.2} parent=5 // pred_fallthru
      _
    %p113 = scmp.le.s32.totalorder 1, %s8
    %p114 = scmp.lt.s32.totalorder %s8, 3
    %p115 = pnand %p113, %p114
    %p116 = pneg %p115
    // Predicated region
    $region25: #{rnnlm_forward.2} parent=5 // pred_check
      _
    $region26: #{rnnlm_forward.2} parent=5 // pred_check_branch
      %118 = sbr.rel (%p115) target = $region28
    $region27: #{rnnlm_forward.2} parent=5 // pred_region
      %s119 = ssub.s32 %s8, 1
      %s120 = smul.u32 4, %s13
      %p121 = scmp.lt.s32.totalorder %s120, 7
      %s122 = scalar_select %p121, %s120, 7
      %s123 = smul.addr %s122, 4
      %s124 = smul.addr %s123, 2
      %s125 = scalar_lea.vmem %s0, %s124
      %p126 = pneg %p34
      %p127 = pneg %p31
      %p128 = pneg %p55
      %p129 = pneg %p52
      %p130 = pneg %p81
      %p131 = pneg %p78
      %s132 = smul.u32 4, %s13
      %p133 = scmp.lt.s32.totalorder %s132, 7
      %s134 = scalar_select %p133, %s132, 7
      %s135 = smul.addr %s134, 2
      %s136 = scalar_lea.vmem %s2, %s135
      %s137 = smul.u32 4, %s13
      %p138 = scmp.lt.s32.totalorder %s137, 7
      %s139 = scalar_select %p138, %s137, 7
      %s140 = smul.addr %s139, 4
      %s141 = smul.addr %s140, 2
      %s142 = scalar_lea.vmem %s0, %s141
      %s143 = smul.u32 4, %s13
      %s144 = smul.u32 4, %s13
      %p145 = scmp.lt.s32.totalorder %s144, 7
      %s146 = scalar_select %p145, %s144, 7
      %s147 = smul.addr %s146, 2
      %s148 = scalar_lea.vmem %s2, %s147
      %s149 = smul.u32 4, %s13
      %p151 = scmp.eq.s32.totalorder %s13, 0
      // Predicated region
      $region29: #{rnnlm_forward.2} parent=27 // pred_check
        %p152 = pneg %p151
      $region30: #{rnnlm_forward.2} parent=27 // pred_check_branch
        %154 = sbr.rel (%p152) target = $region32
      $region31: #{rnnlm_forward.2} parent=27 // pred_region
        %155 = vst [vmem:[#allocation2] sm:$0x3] 0.0
        %156 = vst [vmem:[#allocation3] sm:$0x3] 0.0
      $region32: #{rnnlm_forward.2} parent=27 // pred_fallthru
        _
      %v157 = vld [vmem:[%s1] sm:$0xff]
      %v158 = vld [vmem:[%s1 + $0x8] sm:$0xff]
      %v159 = vld [vmem:[%s1 + $0x10] sm:$0xff]
      %v160 = vld [vmem:[%s1 + $0x18] sm:$0xff]
      %v161 = vld [vmem:[%s1 + $0x20] sm:$0xff]
      %v162 = vld [vmem:[%s1 + $0x28] sm:$0xff]
      %v163 = vld [vmem:[%s1 + $0x30] sm:$0xff]
      %v164 = vld [vmem:[%s1 + $0x38] sm:$0xff]
      %v165 = vld [vmem:[%s1 + $0x40] sm:$0xff]
      %v166 = vld [vmem:[%s1 + $0x48] sm:$0xff]
      %v167 = vld [vmem:[%s1 + $0x50] sm:$0xff]
      %v168 = vld [vmem:[%s1 + $0x58] sm:$0xff]
      %v169 = vld [vmem:[%s1 + $0x60] sm:$0xff]
      %v170 = vld [vmem:[%s1 + $0x68] sm:$0xff]
      %v171 = vld [vmem:[%s1 + $0x70] sm:$0xff]
      %v172 = vld [vmem:[%s1 + $0x78] sm:$0xff]
      %v173 = vld [vmem:[%s1 + $0x80] sm:$0xff]
      %v174 = vld [vmem:[%s1 + $0x88] sm:$0xff]
      %v175 = vld [vmem:[%s1 + $0x90] sm:$0xff]
      %v176 = vld [vmem:[%s1 + $0x98] sm:$0xff]
      %v177 = vld [vmem:[%s1 + $0xa0] sm:$0xff]
      %v178 = vld [vmem:[%s1 + $0xa8] sm:$0xff]
      %v179 = vld [vmem:[%s1 + $0xb0] sm:$0xff]
      %v180 = vld [vmem:[%s1 + $0xb8] sm:$0xff]
      %v181 = vld [vmem:[%s1 + $0xc0] sm:$0xff]
      %v182 = vld [vmem:[%s1 + $0xc8] sm:$0xff]
      %v183 = vld [vmem:[%s1 + $0xd0] sm:$0xff]
      %v184 = vld [vmem:[%s1 + $0xd8] sm:$0xff]
      %v185 = vld [vmem:[%s1 + $0xe0] sm:$0xff]
      %v186 = vld [vmem:[%s1 + $0xe8] sm:$0xff]
      %v187 = vld [vmem:[%s1 + $0xf0] sm:$0xff]
      %v188 = vld [vmem:[%s1 + $0xf8] sm:$0xff]
      %v189 = vld [vmem:[#allocation2] sm:$0x3]
      %v190 = vld [vmem:[#allocation3] sm:$0x3]
      %v191 = vld [vmem:[%s142] sm:$0xff]
      %v192 = vpack.c.bf16 %v189, %v189
      %v225 = vunpack.c.l.b16 %v157
      %v226 = vunpack.c.h.b16 %v157
      %v227 = vunpack.c.l.b16 %v158
      %v228 = vunpack.c.h.b16 %v158
      %v229 = vunpack.c.l.b16 %v159
      %v230 = vunpack.c.h.b16 %v159
      %v231 = vunpack.c.l.b16 %v160
      %v232 = vunpack.c.h.b16 %v160
      %v233 = vunpack.c.l.b16 %v161
      %v234 = vunpack.c.h.b16 %v161
      %v235 = vunpack.c.l.b16 %v162
      %v236 = vunpack.c.h.b16 %v162
      %v237 = vunpack.c.l.b16 %v163
      %v238 = vunpack.c.h.b16 %v163
      %v239 = vunpack.c.l.b16 %v164
      %v240 = vunpack.c.h.b16 %v164
      %v241 = vunpack.c.l.b16 %v165
      %v242 = vunpack.c.h.b16 %v165
      %v243 = vunpack.c.l.b16 %v166
      %v244 = vunpack.c.h.b16 %v166
      %v245 = vunpack.c.l.b16 %v167
      %v246 = vunpack.c.h.b16 %v167
      %v247 = vunpack.c.l.b16 %v168
      %v248 = vunpack.c.h.b16 %v168
      %v249 = vunpack.c.l.b16 %v169
      %v250 = vunpack.c.h.b16 %v169
      %v251 = vunpack.c.l.b16 %v170
      %v252 = vunpack.c.h.b16 %v170
      %v253 = vunpack.c.l.b16 %v171
      %v254 = vunpack.c.h.b16 %v171
      %v255 = vunpack.c.l.b16 %v172
      %v256 = vunpack.c.h.b16 %v172
      %v257 = vunpack.c.l.b16 %v173
      %v258 = vunpack.c.h.b16 %v173
      %v259 = vunpack.c.l.b16 %v174
      %v260 = vunpack.c.h.b16 %v174
      %v261 = vunpack.c.l.b16 %v175
      %v262 = vunpack.c.h.b16 %v175
      %v263 = vunpack.c.l.b16 %v176
      %v264 = vunpack.c.h.b16 %v176
      %v265 = vunpack.c.l.b16 %v177
      %v266 = vunpack.c.h.b16 %v177
      %v267 = vunpack.c.l.b16 %v178
      %v268 = vunpack.c.h.b16 %v178
      %v269 = vunpack.c.l.b16 %v179
      %v270 = vunpack.c.h.b16 %v179
      %v271 = vunpack.c.l.b16 %v180
      %v272 = vunpack.c.h.b16 %v180
      %v273 = vunpack.c.l.b16 %v181
      %v274 = vunpack.c.h.b16 %v181
      %v275 = vunpack.c.l.b16 %v182
      %v276 = vunpack.c.h.b16 %v182
      %v277 = vunpack.c.l.b16 %v183
      %v278 = vunpack.c.h.b16 %v183
      %v279 = vunpack.c.l.b16 %v184
      %v280 = vunpack.c.h.b16 %v184
      %v281 = vunpack.c.l.b16 %v185
      %v282 = vunpack.c.h.b16 %v185
      %v283 = vunpack.c.l.b16 %v186
      %v284 = vunpack.c.h.b16 %v186
      %v285 = vunpack.c.l.b16 %v187
      %v286 = vunpack.c.h.b16 %v187
      %v287 = vunpack.c.l.b16 %v188
      %v288 = vunpack.c.h.b16 %v188
      %v289 = vpack.c.b16 %v229, %v225
      %v290 = vpack.c.b16 %v230, %v226
      %v291 = vpack.c.b16 %v231, %v227
      %v292 = vpack.c.b16 %v232, %v228
      %v293 = vpack.c.b16 %v237, %v233
      %v294 = vpack.c.b16 %v238, %v234
      %v295 = vpack.c.b16 %v239, %v235
      %v296 = vpack.c.b16 %v240, %v236
      %v297 = vpack.c.b16 %v245, %v241
      %v298 = vpack.c.b16 %v246, %v242
      %v299 = vpack.c.b16 %v247, %v243
      %v300 = vpack.c.b16 %v248, %v244
      %v301 = vpack.c.b16 %v253, %v249
      %v302 = vpack.c.b16 %v254, %v250
      %v303 = vpack.c.b16 %v255, %v251
      %v304 = vpack.c.b16 %v256, %v252
      %v305 = vpack.c.b16 %v261, %v257
      %v306 = vpack.c.b16 %v262, %v258
      %v307 = vpack.c.b16 %v263, %v259
      %v308 = vpack.c.b16 %v264, %v260
      %v309 = vpack.c.b16 %v269, %v265
      %v310 = vpack.c.b16 %v270, %v266
      %v311 = vpack.c.b16 %v271, %v267
      %v312 = vpack.c.b16 %v272, %v268
      %v313 = vpack.c.b16 %v277, %v273
      %v314 = vpack.c.b16 %v278, %v274
      %v315 = vpack.c.b16 %v279, %v275
      %v316 = vpack.c.b16 %v280, %v276
      %v317 = vpack.c.b16 %v285, %v281
      %v318 = vpack.c.b16 %v286, %v282
      %v319 = vpack.c.b16 %v287, %v283
      %v320 = vpack.c.b16 %v288, %v284
      %353 = vmatprep.subr.bf16.mxu0 %v290
      %354 = vmatpush1.bf16.msra.mxu0 %v289
      %355 = vmatprep.subr.bf16.mxu0 %v294
      %356 = vmatpush1.bf16.msra.mxu0 %v293
      %357 = vmatprep.subr.bf16.mxu0 %v298
      %358 = vmatpush1.bf16.msra.mxu0 %v297
      %359 = vmatprep.subr.bf16.mxu0 %v302
      %360 = vmatpush1.bf16.msra.mxu0 %v301
      %361 = vmatprep.subr.bf16.mxu0 %v306
      %362 = vmatpush1.bf16.msra.mxu0 %v305
      %363 = vmatprep.subr.bf16.mxu0 %v310
      %364 = vmatpush1.bf16.msra.mxu0 %v309
      %365 = vmatprep.subr.bf16.mxu0 %v314
      %366 = vmatpush1.bf16.msra.mxu0 %v313
      %367 = vmatprep.subr.bf16.mxu0 %v318
      %368 = vmatpush1.bf16.msra.mxu0 %v317
      %369 = vmatprep.subr.bf16.mxu0 0
      %370 = vmatpush1.bf16.msra.mxu0 0
      %371 = vmatprep.subr.bf16.mxu0 0
      %372 = vmatpush1.bf16.msra.mxu0 0
      %373 = vmatprep.subr.bf16.mxu0 0
      %374 = vmatpush1.bf16.msra.mxu0 0
      %375 = vmatprep.subr.bf16.mxu0 0
      %376 = vmatpush1.bf16.msra.mxu0 0
      %377 = vmatprep.subr.bf16.mxu0 0
      %378 = vmatpush1.bf16.msra.mxu0 0
      %379 = vmatprep.subr.bf16.mxu0 0
      %380 = vmatpush1.bf16.msra.mxu0 0
      %381 = vmatprep.subr.bf16.mxu0 0
      %382 = vmatpush1.bf16.msra.mxu0 0
      %383 = vmatprep.subr.bf16.mxu0 0
      %384 = vmatpush1.bf16.msra.mxu0 0
      %385 = vmatprep.mubr.bf16.mxu0 0
      %386 = vmatmul.mubr.bf16.gmra.mrb[0].mxu0 %v192
      %v387 = vpop.f32.mrb[0].mxu0
      %v388 = vadd.f32 0.0, %v387
      %v389 = vpop.f32.mrb[0].mxu0
      %v390 = vadd.f32 0.0, %v389
      %v391 = vpop.f32.mrb[0].mxu0
      %v392 = vpop.f32.mrb[0].mxu0
      %393 = vdwg.mxu0
      %394 = vmatprep.subr.bf16.mxu0 %v292
      %395 = vmatpush1.bf16.msra.mxu0 %v291
      %396 = vmatprep.subr.bf16.mxu0 %v296
      %397 = vmatpush1.bf16.msra.mxu0 %v295
      %398 = vmatprep.subr.bf16.mxu0 %v300
      %399 = vmatpush1.bf16.msra.mxu0 %v299
      %400 = vmatprep.subr.bf16.mxu0 %v304
      %401 = vmatpush1.bf16.msra.mxu0 %v303
      %402 = vmatprep.subr.bf16.mxu0 %v308
      %403 = vmatpush1.bf16.msra.mxu0 %v307
      %404 = vmatprep.subr.bf16.mxu0 %v312
      %405 = vmatpush1.bf16.msra.mxu0 %v311
      %406 = vmatprep.subr.bf16.mxu0 %v316
      %407 = vmatpush1.bf16.msra.mxu0 %v315
      %408 = vmatprep.subr.bf16.mxu0 %v320
      %409 = vmatpush1.bf16.msra.mxu0 %v319
      %410 = vmatprep.subr.bf16.mxu0 0
      %411 = vmatpush1.bf16.msra.mxu0 0
      %412 = vmatprep.subr.bf16.mxu0 0
      %413 = vmatpush1.bf16.msra.mxu0 0
      %414 = vmatprep.subr.bf16.mxu0 0
      %415 = vmatpush1.bf16.msra.mxu0 0
      %416 = vmatprep.subr.bf16.mxu0 0
      %417 = vmatpush1.bf16.msra.mxu0 0
      %418 = vmatprep.subr.bf16.mxu0 0
      %419 = vmatpush1.bf16.msra.mxu0 0
      %420 = vmatprep.subr.bf16.mxu0 0
      %421 = vmatpush1.bf16.msra.mxu0 0
      %422 = vmatprep.subr.bf16.mxu0 0
      %423 = vmatpush1.bf16.msra.mxu0 0
      %424 = vmatprep.subr.bf16.mxu0 0
      %425 = vmatpush1.bf16.msra.mxu0 0
      %426 = vmatprep.mubr.bf16.mxu0 0
      %427 = vmatmul.mubr.bf16.gmra.mrb[0].mxu0 %v192
      %v428 = vpop.f32.mrb[0].mxu0
      %v429 = vadd.f32 0.0, %v428
      %v430 = vpop.f32.mrb[0].mxu0
      %v431 = vadd.f32 0.0, %v430
      %v432 = vpop.f32.mrb[0].mxu0
      %v433 = vpop.f32.mrb[0].mxu0
      %434 = vdwg.mxu0
      %v439 = vcombine.low %v388, %v390
      %v440 = vcombine.low %v429, %v431
      %v442 = vunpack.c.l.s4 1983009808
      %v443 = vunpack.c.0.s8 %v442
      %v444 = vlaneseq
      %v445 = vshrl.u32 %v444, 7
      %v446 = vsub.s32 %v443, %v445
      %v447 = vrot.slane %v439, %v446
      %v449 = vunpack.c.l.s4 1983009808
      %v450 = vunpack.c.0.s8 %v449
      %v451 = vlaneseq
      %v452 = vshrl.u32 %v451, 7
      %v453 = vsub.s32 %v450, %v452
      %v454 = vrot.slane %v440, %v453
      %v455 = vcombine.low %v447, %v454
      %v457 = vadd.f32 %v191, %v455
      %v458 = vxor.u32 %v457, 2147483648
      %v459 = vmul.f32 %v458, 1.442695
      %v460 = vpow.pop %v459
      %v461 = vadd.f32 %v460, 1.0
      %v462 = vrcp.pop %v461
      %v463 = vmul.f32 1.0, %v462
      %v465 = vrot.slane %v457, 2
      %v467 = vxor.u32 %v465, 2147483648
      %v468 = vmul.f32 %v467, 1.442695
      %v469 = vpow.pop %v468
      %v470 = vadd.f32 %v469, 1.0
      %v471 = vrcp.pop %v470
      %v472 = vmul.f32 1.0, %v471
      %v473 = vrot.slane %v457, 4
      %v475 = vtanh.pop %v473
      %v476 = vrot.slane %v457, 6
      %v478 = vxor.u32 %v476, 2147483648
      %v479 = vmul.f32 %v478, 1.442695
      %v480 = vpow.pop %v479
      %v481 = vadd.f32 %v480, 1.0
      %v482 = vrcp.pop %v481
      %v483 = vmul.f32 1.0, %v482
      %v484 = vmul.f32 %v472, %v190
      %v485 = vmul.f32 %v463, %v475
      %v486 = vadd.f32 %v484, %v485
      %v487 = vtanh.pop %v486
      %v488 = vmul.f32 %v483, %v487
      %489 = vst [vmem:[%s148] sm:$0x3] %v488
      %s490 = scalar_lea.vmem %s142, 8
      %v491 = vld [vmem:[%s490] sm:$0xff]
      %v492 = vpack.c.bf16 %v488, %v488
      %493 = vmatprep.subr.bf16.mxu0 %v290
      %494 = vmatpush1.bf16.msra.mxu0 %v289
      %495 = vmatprep.subr.bf16.mxu0 %v294
      %496 = vmatpush1.bf16.msra.mxu0 %v293
      %497 = vmatprep.subr.bf16.mxu0 %v298
      %498 = vmatpush1.bf16.msra.mxu0 %v297
      %499 = vmatprep.subr.bf16.mxu0 %v302
      %500 = vmatpush1.bf16.msra.mxu0 %v301
      %501 = vmatprep.subr.bf16.mxu0 %v306
      %502 = vmatpush1.bf16.msra.mxu0 %v305
      %503 = vmatprep.subr.bf16.mxu0 %v310
      %504 = vmatpush1.bf16.msra.mxu0 %v309
      %505 = vmatprep.subr.bf16.mxu0 %v314
      %506 = vmatpush1.bf16.msra.mxu0 %v313
      %507 = vmatprep.subr.bf16.mxu0 %v318
      %508 = vmatpush1.bf16.msra.mxu0 %v317
      %509 = vmatprep.subr.bf16.mxu0 0
      %510 = vmatpush1.bf16.msra.mxu0 0
      %511 = vmatprep.subr.bf16.mxu0 0
      %512 = vmatpush1.bf16.msra.mxu0 0
      %513 = vmatprep.subr.bf16.mxu0 0
      %514 = vmatpush1.bf16.msra.mxu0 0
      %515 = vmatprep.subr.bf16.mxu0 0
      %516 = vmatpush1.bf16.msra.mxu0 0
      %517 = vmatprep.subr.bf16.mxu0 0
      %518 = vmatpush1.bf16.msra.mxu0 0
      %519 = vmatprep.subr.bf16.mxu0 0
      %520 = vmatpush1.bf16.msra.mxu0 0
      %521 = vmatprep.subr.bf16.mxu0 0
      %522 = vmatpush1.bf16.msra.mxu0 0
      %523 = vmatprep.subr.bf16.mxu0 0
      %524 = vmatpush1.bf16.msra.mxu0 0
      %525 = vmatprep.mubr.bf16.mxu0 0
      %526 = vmatmul.mubr.bf16.gmra.mrb[0].mxu0 %v492
      %v527 = vpop.f32.mrb[0].mxu0
      %v528 = vadd.f32 0.0, %v527
      %v529 = vpop.f32.mrb[0].mxu0
      %v530 = vadd.f32 0.0, %v529
      %v531 = vpop.f32.mrb[0].mxu0
      %v532 = vpop.f32.mrb[0].mxu0
      %533 = vdwg.mxu0
      %534 = vmatprep.subr.bf16.mxu0 %v292
      %535 = vmatpush1.bf16.msra.mxu0 %v291
      %536 = vmatprep.subr.bf16.mxu0 %v296
      %537 = vmatpush1.bf16.msra.mxu0 %v295
      %538 = vmatprep.subr.bf16.mxu0 %v300
      %539 = vmatpush1.bf16.msra.mxu0 %v299
      %540 = vmatprep.subr.bf16.mxu0 %v304
      %541 = vmatpush1.bf16.msra.mxu0 %v303
      %542 = vmatprep.subr.bf16.mxu0 %v308
      %543 = vmatpush1.bf16.msra.mxu0 %v307
      %544 = vmatprep.subr.bf16.mxu0 %v312
      %545 = vmatpush1.bf16.msra.mxu0 %v311
      %546 = vmatprep.subr.bf16.mxu0 %v316
      %547 = vmatpush1.bf16.msra.mxu0 %v315
      %548 = vmatprep.subr.bf16.mxu0 %v320
      %549 = vmatpush1.bf16.msra.mxu0 %v319
      %550 = vmatprep.subr.bf16.mxu0 0
      %551 = vmatpush1.bf16.msra.mxu0 0
      %552 = vmatprep.subr.bf16.mxu0 0
      %553 = vmatpush1.bf16.msra.mxu0 0
      %554 = vmatprep.subr.bf16.mxu0 0
      %555 = vmatpush1.bf16.msra.mxu0 0
      %556 = vmatprep.subr.bf16.mxu0 0
      %557 = vmatpush1.bf16.msra.mxu0 0
      %558 = vmatprep.subr.bf16.mxu0 0
      %559 = vmatpush1.bf16.msra.mxu0 0
      %560 = vmatprep.subr.bf16.mxu0 0
      %561 = vmatpush1.bf16.msra.mxu0 0
      %562 = vmatprep.subr.bf16.mxu0 0
      %563 = vmatpush1.bf16.msra.mxu0 0
      %564 = vmatprep.subr.bf16.mxu0 0
      %565 = vmatpush1.bf16.msra.mxu0 0
      %566 = vmatprep.mubr.bf16.mxu0 0
      %567 = vmatmul.mubr.bf16.gmra.mrb[0].mxu0 %v492
      %v568 = vpop.f32.mrb[0].mxu0
      %v569 = vadd.f32 0.0, %v568
      %v570 = vpop.f32.mrb[0].mxu0
      %v571 = vadd.f32 0.0, %v570
      %v572 = vpop.f32.mrb[0].mxu0
      %v573 = vpop.f32.mrb[0].mxu0
      %574 = vdwg.mxu0
      %v579 = vcombine.low %v528, %v530
      %v580 = vcombine.low %v569, %v571
      %v582 = vunpack.c.l.s4 1983009808
      %v583 = vunpack.c.0.s8 %v582
      %v584 = vlaneseq
      %v585 = vshrl.u32 %v584, 7
      %v586 = vsub.s32 %v583, %v585
      %v587 = vrot.slane %v579, %v586
      %v589 = vunpack.c.l.s4 1983009808
      %v590 = vunpack.c.0.s8 %v589
      %v591 = vlaneseq
      %v592 = vshrl.u32 %v591, 7
      %v593 = vsub.s32 %v590, %v592
      %v594 = vrot.slane %v580, %v593
      %v595 = vcombine.low %v587, %v594
      %v597 = vadd.f32 %v491, %v595
      %v598 = vxor.u32 %v597, 2147483648
      %v599 = vmul.f32 %v598, 1.442695
      %v600 = vpow.pop %v599
      %v601 = vadd.f32 %v600, 1.0
      %v602 = vrcp.pop %v601
      %v603 = vmul.f32 1.0, %v602
      %v605 = vrot.slane %v597, 2
      %v607 = vxor.u32 %v605, 2147483648
      %v608 = vmul.f32 %v607, 1.442695
      %v609 = vpow.pop %v608
      %v610 = vadd.f32 %v609, 1.0
      %v611 = vrcp.pop %v610
      %v612 = vmul.f32 1.0, %v611
      %v613 = vrot.slane %v597, 4
      %v615 = vtanh.pop %v613
      %v616 = vrot.slane %v597, 6
      %v618 = vxor.u32 %v616, 2147483648
      %v619 = vmul.f32 %v618, 1.442695
      %v620 = vpow.pop %v619
      %v621 = vadd.f32 %v620, 1.0
      %v622 = vrcp.pop %v621
      %v623 = vmul.f32 1.0, %v622
      %v624 = vmul.f32 %v612, %v486
      %v625 = vmul.f32 %v603, %v615
      %v626 = vadd.f32 %v624, %v625
      %v627 = vtanh.pop %v626
      %v628 = vmul.f32 %v623, %v627
      %s629 = scalar_lea.vmem %s148, 2
      %630 = vst [vmem:[%s629] sm:$0x3] %v628
      %s631 = scalar_lea.vmem %s142, 16
      %v632 = vld [vmem:[%s631] sm:$0xff]
      %v633 = vpack.c.bf16 %v628, %v628
      %634 = vmatprep.subr.bf16.mxu0 %v290
      %635 = vmatpush1.bf16.msra.mxu0 %v289
      %636 = vmatprep.subr.bf16.mxu0 %v294
      %637 = vmatpush1.bf16.msra.mxu0 %v293
      %638 = vmatprep.subr.bf16.mxu0 %v298
      %639 = vmatpush1.bf16.msra.mxu0 %v297
      %640 = vmatprep.subr.bf16.mxu0 %v302
      %641 = vmatpush1.bf16.msra.mxu0 %v301
      %642 = vmatprep.subr.bf16.mxu0 %v306
      %643 = vmatpush1.bf16.msra.mxu0 %v305
      %644 = vmatprep.subr.bf16.mxu0 %v310
      %645 = vmatpush1.bf16.msra.mxu0 %v309
      %646 = vmatprep.subr.bf16.mxu0 %v314
      %647 = vmatpush1.bf16.msra.mxu0 %v313
      %648 = vmatprep.subr.bf16.mxu0 %v318
      %649 = vmatpush1.bf16.msra.mxu0 %v317
      %650 = vmatprep.subr.bf16.mxu0 0
      %651 = vmatpush1.bf16.msra.mxu0 0
      %652 = vmatprep.subr.bf16.mxu0 0
      %653 = vmatpush1.bf16.msra.mxu0 0
      %654 = vmatprep.subr.bf16.mxu0 0
      %655 = vmatpush1.bf16.msra.mxu0 0
      %656 = vmatprep.subr.bf16.mxu0 0
      %657 = vmatpush1.bf16.msra.mxu0 0
      %658 = vmatprep.subr.bf16.mxu0 0
      %659 = vmatpush1.bf16.msra.mxu0 0
      %660 = vmatprep.subr.bf16.mxu0 0
      %661 = vmatpush1.bf16.msra.mxu0 0
      %662 = vmatprep.subr.bf16.mxu0 0
      %663 = vmatpush1.bf16.msra.mxu0 0
      %664 = vmatprep.subr.bf16.mxu0 0
      %665 = vmatpush1.bf16.msra.mxu0 0
      %666 = vmatprep.mubr.bf16.mxu0 0
      %667 = vmatmul.mubr.bf16.gmra.mrb[0].mxu0 %v633
      %v668 = vpop.f32.mrb[0].mxu0
      %v669 = vadd.f32 0.0, %v668
      %v670 = vpop.f32.mrb[0].mxu0
      %v671 = vadd.f32 0.0, %v670
      %v672 = vpop.f32.mrb[0].mxu0
      %v673 = vpop.f32.mrb[0].mxu0
      %674 = vdwg.mxu0
      %675 = vmatprep.subr.bf16.mxu0 %v292
      %676 = vmatpush1.bf16.msra.mxu0 %v291
      %677 = vmatprep.subr.bf16.mxu0 %v296
      %678 = vmatpush1.bf16.msra.mxu0 %v295
      %679 = vmatprep.subr.bf16.mxu0 %v300
      %680 = vmatpush1.bf16.msra.mxu0 %v299
      %681 = vmatprep.subr.bf16.mxu0 %v304
      %682 = vmatpush1.bf16.msra.mxu0 %v303
      %683 = vmatprep.subr.bf16.mxu0 %v308
      %684 = vmatpush1.bf16.msra.mxu0 %v307
      %685 = vmatprep.subr.bf16.mxu0 %v312
      %686 = vmatpush1.bf16.msra.mxu0 %v311
      %687 = vmatprep.subr.bf16.mxu0 %v316
      %688 = vmatpush1.bf16.msra.mxu0 %v315
      %689 = vmatprep.subr.bf16.mxu0 %v320
      %690 = vmatpush1.bf16.msra.mxu0 %v319
      %691 = vmatprep.subr.bf16.mxu0 0
      %692 = vmatpush1.bf16.msra.mxu0 0
      %693 = vmatprep.subr.bf16.mxu0 0
      %694 = vmatpush1.bf16.msra.mxu0 0
      %695 = vmatprep.subr.bf16.mxu0 0
      %696 = vmatpush1.bf16.msra.mxu0 0
      %697 = vmatprep.subr.bf16.mxu0 0
      %698 = vmatpush1.bf16.msra.mxu0 0
      %699 = vmatprep.subr.bf16.mxu0 0
      %700 = vmatpush1.bf16.msra.mxu0 0
      %701 = vmatprep.subr.bf16.mxu0 0
      %702 = vmatpush1.bf16.msra.mxu0 0
      %703 = vmatprep.subr.bf16.mxu0 0
      %704 = vmatpush1.bf16.msra.mxu0 0
      %705 = vmatprep.subr.bf16.mxu0 0
      %706 = vmatpush1.bf16.msra.mxu0 0
      %707 = vmatprep.mubr.bf16.mxu0 0
      %708 = vmatmul.mubr.bf16.gmra.mrb[0].mxu0 %v633
      %v709 = vpop.f32.mrb[0].mxu0
      %v710 = vadd.f32 0.0, %v709
      %v711 = vpop.f32.mrb[0].mxu0
      %v712 = vadd.f32 0.0, %v711
      %v713 = vpop.f32.mrb[0].mxu0
      %v714 = vpop.f32.mrb[0].mxu0
      %715 = vdwg.mxu0
      %v720 = vcombine.low %v669, %v671
      %v721 = vcombine.low %v710, %v712
      %v723 = vunpack.c.l.s4 1983009808
      %v724 = vunpack.c.0.s8 %v723
      %v725 = vlaneseq
      %v726 = vshrl.u32 %v725, 7
      %v727 = vsub.s32 %v724, %v726
      %v728 = vrot.slane %v720, %v727
      %v730 = vunpack.c.l.s4 1983009808
      %v731 = vunpack.c.0.s8 %v730
      %v732 = vlaneseq
      %v733 = vshrl.u32 %v732, 7
      %v734 = vsub.s32 %v731, %v733
      %v735 = vrot.slane %v721, %v734
      %v736 = vcombine.low %v728, %v735
      %v738 = vadd.f32 %v632, %v736
      %v739 = vxor.u32 %v738, 2147483648
      %v740 = vmul.f32 %v739, 1.442695
      %v741 = vpow.pop %v740
      %v742 = vadd.f32 %v741, 1.0
      %v743 = vrcp.pop %v742
      %v744 = vmul.f32 1.0, %v743
      %v746 = vrot.slane %v738, 2
      %v748 = vxor.u32 %v746, 2147483648
      %v749 = vmul.f32 %v748, 1.442695
      %v750 = vpow.pop %v749
      %v751 = vadd.f32 %v750, 1.0
      %v752 = vrcp.pop %v751
      %v753 = vmul.f32 1.0, %v752
      %v754 = vrot.slane %v738, 4
      %v756 = vtanh.pop %v754
      %v757 = vrot.slane %v738, 6
      %v759 = vxor.u32 %v757, 2147483648
      %v760 = vmul.f32 %v759, 1.442695
      %v761 = vpow.pop %v760
      %v762 = vadd.f32 %v761, 1.0
      %v763 = vrcp.pop %v762
      %v764 = vmul.f32 1.0, %v763
      %v765 = vmul.f32 %v753, %v626
      %v766 = vmul.f32 %v744, %v756
      %v767 = vadd.f32 %v765, %v766
      %v768 = vtanh.pop %v767
      %v769 = vmul.f32 %v764, %v768
      %s770 = scalar_lea.vmem %s148, 4
      %771 = vst [vmem:[%s770] sm:$0x3] %v769
      %s772 = scalar_lea.vmem %s142, 24
      %v773 = vld [vmem:[%s772] sm:$0xff]
      %v774 = vpack.c.bf16 %v769, %v769
      %775 = vmatprep.subr.bf16.mxu0 %v290
      %776 = vmatpush1.bf16.msra.mxu0 %v289
      %777 = vmatprep.subr.bf16.mxu0 %v294
      %778 = vmatpush1.bf16.msra.mxu0 %v293
      %779 = vmatprep.subr.bf16.mxu0 %v298
      %780 = vmatpush1.bf16.msra.mxu0 %v297
      %781 = vmatprep.subr.bf16.mxu0 %v302
      %782 = vmatpush1.bf16.msra.mxu0 %v301
      %783 = vmatprep.subr.bf16.mxu0 %v306
      %784 = vmatpush1.bf16.msra.mxu0 %v305
      %785 = vmatprep.subr.bf16.mxu0 %v310
      %786 = vmatpush1.bf16.msra.mxu0 %v309
      %787 = vmatprep.subr.bf16.mxu0 %v314
      %788 = vmatpush1.bf16.msra.mxu0 %v313
      %789 = vmatprep.subr.bf16.mxu0 %v318
      %790 = vmatpush1.bf16.msra.mxu0 %v317
      %791 = vmatprep.subr.bf16.mxu0 0
      %792 = vmatpush1.bf16.msra.mxu0 0
      %793 = vmatprep.subr.bf16.mxu0 0
      %794 = vmatpush1.bf16.msra.mxu0 0
      %795 = vmatprep.subr.bf16.mxu0 0
      %796 = vmatpush1.bf16.msra.mxu0 0
      %797 = vmatprep.subr.bf16.mxu0 0
      %798 = vmatpush1.bf16.msra.mxu0 0
      %799 = vmatprep.subr.bf16.mxu0 0
      %800 = vmatpush1.bf16.msra.mxu0 0
      %801 = vmatprep.subr.bf16.mxu0 0
      %802 = vmatpush1.bf16.msra.mxu0 0
      %803 = vmatprep.subr.bf16.mxu0 0
      %804 = vmatpush1.bf16.msra.mxu0 0
      %805 = vmatprep.subr.bf16.mxu0 0
      %806 = vmatpush1.bf16.msra.mxu0 0
      %807 = vmatprep.mubr.bf16.mxu0 0
      %808 = vmatmul.mubr.bf16.gmra.mrb[0].mxu0 %v774
      %v809 = vpop.f32.mrb[0].mxu0
      %v810 = vadd.f32 0.0, %v809
      %v811 = vpop.f32.mrb[0].mxu0
      %v812 = vadd.f32 0.0, %v811
      %v813 = vpop.f32.mrb[0].mxu0
      %v814 = vpop.f32.mrb[0].mxu0
      %815 = vdwg.mxu0
      %816 = vmatprep.subr.bf16.mxu0 %v292
      %817 = vmatpush1.bf16.msra.mxu0 %v291
      %818 = vmatprep.subr.bf16.mxu0 %v296
      %819 = vmatpush1.bf16.msra.mxu0 %v295
      %820 = vmatprep.subr.bf16.mxu0 %v300
      %821 = vmatpush1.bf16.msra.mxu0 %v299
      %822 = vmatprep.subr.bf16.mxu0 %v304
      %823 = vmatpush1.bf16.msra.mxu0 %v303
      %824 = vmatprep.subr.bf16.mxu0 %v308
      %825 = vmatpush1.bf16.msra.mxu0 %v307
      %826 = vmatprep.subr.bf16.mxu0 %v312
      %827 = vmatpush1.bf16.msra.mxu0 %v311
      %828 = vmatprep.subr.bf16.mxu0 %v316
      %829 = vmatpush1.bf16.msra.mxu0 %v315
      %830 = vmatprep.subr.bf16.mxu0 %v320
      %831 = vmatpush1.bf16.msra.mxu0 %v319
      %832 = vmatprep.subr.bf16.mxu0 0
      %833 = vmatpush1.bf16.msra.mxu0 0
      %834 = vmatprep.subr.bf16.mxu0 0
      %835 = vmatpush1.bf16.msra.mxu0 0
      %836 = vmatprep.subr.bf16.mxu0 0
      %837 = vmatpush1.bf16.msra.mxu0 0
      %838 = vmatprep.subr.bf16.mxu0 0
      %839 = vmatpush1.bf16.msra.mxu0 0
      %840 = vmatprep.subr.bf16.mxu0 0
      %841 = vmatpush1.bf16.msra.mxu0 0
      %842 = vmatprep.subr.bf16.mxu0 0
      %843 = vmatpush1.bf16.msra.mxu0 0
      %844 = vmatprep.subr.bf16.mxu0 0
      %845 = vmatpush1.bf16.msra.mxu0 0
      %846 = vmatprep.subr.bf16.mxu0 0
      %847 = vmatpush1.bf16.msra.mxu0 0
      %848 = vmatprep.mubr.bf16.mxu0 0
      %849 = vmatmul.mubr.bf16.gmra.mrb[0].mxu0 %v774
      %v850 = vpop.f32.mrb[0].mxu0
      %v851 = vadd.f32 0.0, %v850
      %v852 = vpop.f32.mrb[0].mxu0
      %v853 = vadd.f32 0.0, %v852
      %v854 = vpop.f32.mrb[0].mxu0
      %v855 = vpop.f32.mrb[0].mxu0
      %856 = vdwg.mxu0
      %v861 = vcombine.low %v810, %v812
      %v862 = vcombine.low %v851, %v853
      %v864 = vunpack.c.l.s4 1983009808
      %v865 = vunpack.c.0.s8 %v864
      %v866 = vlaneseq
      %v867 = vshrl.u32 %v866, 7
      %v868 = vsub.s32 %v865, %v867
      %v869 = vrot.slane %v861, %v868
      %v871 = vunpack.c.l.s4 1983009808
      %v872 = vunpack.c.0.s8 %v871
      %v873 = vlaneseq
      %v874 = vshrl.u32 %v873, 7
      %v875 = vsub.s32 %v872, %v874
      %v876 = vrot.slane %v862, %v875
      %v877 = vcombine.low %v869, %v876
      %v879 = vadd.f32 %v773, %v877
      %v880 = vxor.u32 %v879, 2147483648
      %v881 = vmul.f32 %v880, 1.442695
      %v882 = vpow.pop %v881
      %v883 = vadd.f32 %v882, 1.0
      %v884 = vrcp.pop %v883
      %v885 = vmul.f32 1.0, %v884
      %v887 = vrot.slane %v879, 2
      %v889 = vxor.u32 %v887, 2147483648
      %v890 = vmul.f32 %v889, 1.442695
      %v891 = vpow.pop %v890
      %v892 = vadd.f32 %v891, 1.0
      %v893 = vrcp.pop %v892
      %v894 = vmul.f32 1.0, %v893
      %v895 = vrot.slane %v879, 4
      %v897 = vtanh.pop %v895
      %v898 = vrot.slane %v879, 6
      %v900 = vxor.u32 %v898, 2147483648
      %v901 = vmul.f32 %v900, 1.442695
      %v902 = vpow.pop %v901
      %v903 = vadd.f32 %v902, 1.0
      %v904 = vrcp.pop %v903
      %v905 = vmul.f32 1.0, %v904
      %v906 = vmul.f32 %v894, %v767
      %v907 = vmul.f32 %v885, %v897
      %v908 = vadd.f32 %v906, %v907
      %v909 = vtanh.pop %v908
      %v910 = vmul.f32 %v905, %v909
      %s911 = scalar_lea.vmem %s148, 6
      %912 = vst [vmem:[%s911] sm:$0x3] %v910
      %913 = vst [vmem:[#allocation2] sm:$0x3] %v910
      %914 = vst [vmem:[#allocation3] sm:$0x3] %v908
      %s915 = smul.u32 4, %s13
      %p916 = scmp.lt.s32.totalorder %s915, 7
      %s917 = scalar_select %p916, %s915, 7
      %s918 = smul.addr %s917, 2
      %s919 = scalar_lea.vmem %s2, %s918
      // Predicated region
      $region33: #{rnnlm_forward.2} parent=27 // pred_check
        %p920 = pneg %p78
      $region34: #{rnnlm_forward.2} parent=27 // pred_check_branch
        %922 = sbr.rel (%p920) target = $region36
      $region35: #{rnnlm_forward.2} parent=27 // pred_region
        %s923 = smul.u32 4, %s13
      $region36: #{rnnlm_forward.2} parent=27 // pred_fallthru
        _
    $region28: #{rnnlm_forward.2} parent=5 // pred_fallthru
      _
    %p924 = scmp.le.s32.totalorder 2, %s8
    // Predicated region
    $region37: #{rnnlm_forward.2} parent=5 // pred_check
      %p925 = pneg %p924
    $region38: #{rnnlm_forward.2} parent=5 // pred_check_branch
      %927 = sbr.rel (%p925) target = $region40
    $region39: #{rnnlm_forward.2} parent=5 // pred_region
      %s928 = ssub.s32 %s8, 2
      // Predicated region
      $region41: #{rnnlm_forward.2} parent=39 // pred_check
        %p929 = pneg %p84
      $region42: #{rnnlm_forward.2} parent=39 // pred_check_branch
        %931 = sbr.rel (%p929) target = $region44
      $region43: #{rnnlm_forward.2} parent=39 // pred_region
        %s932 = smul.u32 4, %s14
        %p933 = scmp.lt.s32.totalorder %s932, 7
        %s934 = scalar_select %p933, %s932, 7
        %s935 = smul.addr %s934, 2
        %s936 = scalar_lea.vmem %s2, %s935
      $region44: #{rnnlm_forward.2} parent=39 // pred_fallthru
        _
    $region40: #{rnnlm_forward.2} parent=5 // pred_fallthru
      _
  $region6: #{rnnlm_forward.2} parent=0 // loop_footer
    %s12 = sadd.s32 1, %s8
  $region7: #{rnnlm_forward.2} parent=0 // loop_footer_branch
    %7 = sbr.rel target = $region3
  $region8: #{rnnlm_forward.2} parent=0 // loop_exit
    _

</llo_original>
